<compile_context>
chip_gen: v5e
topology: v5e:2x2
jax: 0.10.0
libtpu: 0.0.40
codegen_flags: <defaults>
</compile_context>

<pallas_src>
import jax
import jax.numpy as jnp
from jax.experimental import pallas as pl
from jax.experimental.pallas import tpu as pltpu


def _cdiv(a, b):
    return -(-a // b)


def _round_up(a, b):
    return _cdiv(a, b) * b


def _td_linear_kernel(x_ref, w_ref, b_ref, o_ref):
    # x_ref: (TMF, HF) lane-dense, w_ref: (HF, OF), b_ref: (1, OF), o_ref: (TMF, OF)
    acc = jnp.dot(x_ref[...], w_ref[...], preferred_element_type=jnp.float32)
    o_ref[...] = (acc + b_ref[...]).astype(o_ref.dtype)


def _linear_pallas(x2d, weight, bias, *, block_rows=32768,
                   vmem_budget_bytes=24 * 1024 * 1024):
    """y = x2d @ weight.T + bias via a tiled, lane-folded Pallas kernel.

    x2d: (N, H), weight: (O, H), bias: (O,)  ->  (N, O)
    """
    n, h = x2d.shape
    o = weight.shape[0]
    dt = x2d.dtype
    itemsize = jnp.dtype(dt).itemsize

    # ---- fold the small feature dim into the 128-lane dimension -----------
    # (N, H) -> (N/F, F*H) is a free row-major reshape; the matching weight is
    # block-diagonal (F*H, F*O): folded row r, output column j*O+b equals
    # x2d[r*F + j] @ weight.T[:, b] + bias[b].  With H=32 this makes every DMA
    # and vld lane-dense instead of 75% lane padding, and shrinks the output
    # tile (and its masked stores / MXU pops) by 4x.
    f = 128 // h if (h <= 128 and 128 % h == 0) else 1
    hf, of = h * f, o * f

    w_t = jnp.asarray(weight, dt).T                                  # (H, O)
    w_f = jnp.kron(jnp.eye(f, dtype=dt), w_t) if f > 1 else w_t      # (HF, OF)
    b_f = jnp.tile(jnp.asarray(bias, dt).reshape(1, o), (1, f))      # (1, OF)

    # ---- pick the folded row tile ------------------------------------------
    # Big enough that per-step DMA (multi-MiB) hides per-step pipeline
    # overhead; small enough that double-buffered in+out blocks fit the VMEM
    # budget (VMEM blocks pad the last dim to 128 lanes, so the (TMF, OF)
    # output block is counted at 128 lanes too).
    lanes_in = _round_up(hf, 128)
    lanes_out = _round_up(of, 128)
    bytes_per_row = 2 * (lanes_in + lanes_out) * itemsize      # x2: double buffer
    tmf_cap = max(8, (vmem_budget_bytes // bytes_per_row) // 8 * 8)

    nf = _cdiv(n, f)                        # folded row count (before padding)
    tmf = min(max(_cdiv(block_rows, f), 8), tmf_cap, _round_up(nf, 8))
    tmf = _round_up(tmf, 8)

    # Grid: zero-pad rows up to a tile multiple (no divisibility assert).
    # dimension_semantics=("parallel",) lets the runtime ceil-split the grid
    # across both TensorCores on megacore parts (v7x); an explicit even-grid
    # pad would not shorten the critical path, so we skip it.
    steps = _cdiv(nf, tmf)
    nf_pad = steps * tmf
    n_pad = nf_pad * f
    if n_pad != n:
        x2d = jnp.pad(x2d, ((0, n_pad - n), (0, 0)))
    x_f = x2d.reshape(nf_pad, hf)

    vmem_bytes = (2 * tmf * lanes_in * itemsize                      # x blocks
                  + 2 * tmf * lanes_out * itemsize                   # out blocks
                  + 2 * _round_up(hf, 8) * lanes_out * itemsize      # weight
                  + 2 * 8 * lanes_out * itemsize                     # bias
                  + (2 << 20))                                       # headroom
    vmem_bytes = max(int(vmem_bytes), 4 << 20)

    y_f = pl.pallas_call(
        _td_linear_kernel,
        out_shape=jax.ShapeDtypeStruct((nf_pad, of), dt),
        grid_spec=pltpu.PrefetchScalarGridSpec(
            num_scalar_prefetch=0,
            grid=(steps,),
            in_specs=[
                pl.BlockSpec((tmf, hf), lambda i: (i, 0)),
                # Constant block index -> weight/bias are copied in once and
                # stay VMEM-resident; Pallas skips repeat DMAs for unchanged
                # block indices.
                pl.BlockSpec((hf, of), lambda i: (0, 0)),
                pl.BlockSpec((1, of), lambda i: (0, 0)),
            ],
            out_specs=pl.BlockSpec((tmf, of), lambda i: (i, 0)),
        ),
        compiler_params=pltpu.CompilerParams(
            dimension_semantics=("parallel",),
            vmem_limit_bytes=vmem_bytes,
        ),
    )(x_f, w_f, b_f)

    # Un-fold: (NF_pad, F*O) row-major == (N_pad, O); drop the padded rows.
    # TODO(synk): a fully lane-dense (N/128, 128) output (in-kernel relayout)
    # would also remove the lane-masked stores; kept (TMF, F*O) per review
    # option (a) to avoid a risky in-kernel reshape.
    return y_f.reshape(n_pad, o)[:n]


def time_distributed_forward(x, weight, bias, *, block_rows=32768):
    """Pallas implementation of TimeDistributed(nn.Linear(H, O)).forward(x)."""
    if x.ndim <= 2:
        # PyTorch branch: `return self.module(x)`
        x2d = x if x.ndim == 2 else x.reshape(1, -1)
        y = _linear_pallas(x2d, weight, bias, block_rows=block_rows)
        return y if x.ndim == 2 else y.reshape(-1)

    b_dim, t_dim = x.shape[0], x.shape[1]
    # x_reshaped = x.reshape(x.shape[1], x.shape[0], -1) is a pure row-major
    # reinterpretation (no permute); the Linear acts on the last axis only, so
    # the kernel runs directly on the flattened (T*B, H) slab.
    x_reshaped = x.reshape(t_dim, b_dim, -1)
    h = x_reshaped.shape[-1]
    y2d = _linear_pallas(x_reshaped.reshape(t_dim * b_dim, h), weight, bias,
                         block_rows=block_rows)
    o = y2d.shape[-1]
    # y = y.reshape(x.shape[0], x.shape[1], -1): again a pure reshape of the
    # same flat buffer; then squeeze(-1) only if that dim is size 1.
    y = y2d.reshape(b_dim, t_dim, o)
    if y.shape[-1] == 1:
        y = jnp.squeeze(y, axis=-1)
    return y


if __name__ == "__main__":
    B, T, H, O = 2, 8, 32, 1   # small shapes matching the lstm_bgc call site

    key = jax.random.PRNGKey(0)
    kx, kw, kb = jax.random.split(key, 3)
    x = jax.random.normal(kx, (B, T, H), dtype=jnp.float32)
    # deterministic synthetic nn.Linear(H, O) parameters
    bound = 1.0 / (H ** 0.5)
    weight = jax.random.uniform(kw, (O, H), jnp.float32, -bound, bound)
    bias = jax.random.uniform(kb, (O,), jnp.float32, -bound, bound)

    y = time_distributed_forward(x, weight, bias)
    y = jax.block_until_ready(y)

    # Pure-JAX reference of the exact PyTorch semantics.
    x_r = x.reshape(T, B, -1)
    y_ref = (jnp.einsum("tbh,oh->tbo", x_r, weight) + bias).reshape(B, T, -1)
    y_ref = jnp.squeeze(y_ref, -1)

    assert y.shape == (B, T), y.shape
    assert jnp.allclose(y, y_ref, atol=1e-5, rtol=1e-5), \
        float(jnp.max(jnp.abs(y - y_ref)))
    print("KERNEL_OK")
</pallas_src>

<mosaic_0001>
module attributes {stable_mosaic.version = 11 : i64} {
  func.func @_td_linear_kernel(%arg0: i32, %arg1: memref<8x128xf32, #tpu.memory_space<vmem>>, %arg2: memref<128x4xf32, #tpu.memory_space<vmem>>, %arg3: memref<1x4xf32, #tpu.memory_space<vmem>>, %arg4: memref<8x4xf32, #tpu.memory_space<vmem>>) attributes {dimension_semantics = [#tpu.dimension_semantics<parallel>], iteration_bounds = array<i64: 1>, scalar_prefetch = 0 : i64, scratch_operands = 0 : i64, tpu.core_type = #tpu.core_type<tc>, window_params = [{transform_indices = @transform_0, window_bounds = array<i64: 8, 128>}, {pipeline_mode = #tpu.pipeline_mode<synchronous>, transform_indices = @transform_1, window_bounds = array<i64: 128, 4>}, {pipeline_mode = #tpu.pipeline_mode<synchronous>, transform_indices = @transform_2, window_bounds = array<i64: 1, 4>}, {transform_indices = @transform_3, window_bounds = array<i64: 8, 4>}]} {
    %c0 = arith.constant 0 : index
    %c0_0 = arith.constant 0 : index
    %0 = vector.load %arg1[%c0, %c0_0] : memref<8x128xf32, #tpu.memory_space<vmem>>, vector<8x128xf32>
    %c0_1 = arith.constant 0 : index
    %c0_2 = arith.constant 0 : index
    %1 = vector.load %arg2[%c0_1, %c0_2] : memref<128x4xf32, #tpu.memory_space<vmem>>, vector<128x4xf32>
    %cst = arith.constant dense<0.000000e+00> : vector<8x4xf32>
    %2 = tpu.matmul %0, %1, %cst {dimension_numbers = #tpu.dot_dimension_numbers<[1], [0], [0], [1], [0, 0, 1, 1], [], []>} : vector<8x128xf32>, vector<128x4xf32>, vector<8x4xf32> -> vector<8x4xf32>
    %c0_3 = arith.constant 0 : index
    %c0_4 = arith.constant 0 : index
    %3 = vector.load %arg3[%c0_3, %c0_4] : memref<1x4xf32, #tpu.memory_space<vmem>>, vector<1x4xf32>
    %4 = vector.broadcast %3 : vector<1x4xf32> to vector<8x4xf32>
    %5 = arith.addf %2, %4 : vector<8x4xf32>
    %c0_5 = arith.constant 0 : index
    %c0_6 = arith.constant 0 : index
    %6 = vector.load %arg4[%c0_5, %c0_6] : memref<8x4xf32, #tpu.memory_space<vmem>>, vector<8x4xf32>
    tpu.vector_store %arg4[%c0_5, %c0_6], %5 {strides = array<i32>} : memref<8x4xf32, #tpu.memory_space<vmem>>, vector<8x4xf32>,
    return
  }
  func.func @transform_0(%arg0: i32) -> (i32, i32) {
    %c0_i32 = arith.constant 0 : i32
    %c0_i32_0 = arith.constant 0 : i32
    return %arg0, %c0_i32 : i32, i32
  }
  func.func @transform_1(%arg0: i32) -> (i32, i32) {
    %c0_i32 = arith.constant 0 : i32
    %c0_i32_0 = arith.constant 0 : i32
    %c0_i32_1 = arith.constant 0 : i32
    return %c0_i32, %c0_i32_0 : i32, i32
  }
  func.func @transform_2(%arg0: i32) -> (i32, i32) {
    %c0_i32 = arith.constant 0 : i32
    %c0_i32_0 = arith.constant 0 : i32
    %c0_i32_1 = arith.constant 0 : i32
    return %c0_i32, %c0_i32_0 : i32, i32
  }
  func.func @transform_3(%arg0: i32) -> (i32, i32) {
    %c0_i32 = arith.constant 0 : i32
    %c0_i32_0 = arith.constant 0 : i32
    return %arg0, %c0_i32 : i32, i32
  }
}

</mosaic_0001>

<llo_original>
// kernel: tpu_custom_call.1
$region0: #{tpu_custom_call.1}
  #allocation0 [shape = 'u32[]', space=smem, size = 0x4, offset = 0x4, fixed_abs, tag = 'smem constant byte address 0x4 - core index']
  #allocation1 [shape = 'u32[72,128]{1,0:T(1,128)}', space=vmem, size = 0x9000, scoped, tag = 'internal scratch']
  %s0 = inlined_call_operand.vmem [shape: f32[8,128], index: 0, kind: input, shape index: {}]
  %s1 = inlined_call_operand.vmem [shape: f32[128,4], index: 1, kind: input, shape index: {}]
  %s2 = inlined_call_operand.vmem [shape: f32[1,4], index: 2, kind: input, shape index: {}]
  %s3 = inlined_call_operand.vmem [shape: f32[8,4], index: 3, kind: output, shape index: {}]
  %s4 = sld [smem:[#allocation0]]
  $region22: #{tpu_custom_call.1} parent=0
    _
  %s6 = ssub.s32 1, %s4
  %s7 = scalar_select 0, %s6, %s4
  // Predicated region
  $region2: #{tpu_custom_call.1} parent=0 // pred_check
    _
  $region3: #{tpu_custom_call.1} parent=0 // pred_check_branch
    %9 = sbr.rel (0) target = $region5
  $region4: #{tpu_custom_call.1} parent=0 // pred_region
    _
  $region5: #{tpu_custom_call.1} parent=0 // pred_fallthru
    _
  // Predicated region
  $region6: #{tpu_custom_call.1} parent=0 // pred_check
    _
  $region7: #{tpu_custom_call.1} parent=0 // pred_check_branch
    %11 = sbr.rel (0) target = $region9
  $region8: #{tpu_custom_call.1} parent=0 // pred_region
    _
  $region9: #{tpu_custom_call.1} parent=0 // pred_fallthru
    _
  // Predicated region
  $region10: #{tpu_custom_call.1} parent=0 // pred_check
    _
  $region11: #{tpu_custom_call.1} parent=0 // pred_check_branch
    %13 = sbr.rel (0) target = $region13
  $region12: #{tpu_custom_call.1} parent=0 // pred_region
    _
  $region13: #{tpu_custom_call.1} parent=0 // pred_fallthru
    _
  %v14 = vld [vmem:[%s0] sm:$0xff]
  %v15 = vld [vmem:[%s1] sm:$0xff]
  %v16 = vld [vmem:[%s1 + $0x8] sm:$0xff]
  %v17 = vld [vmem:[%s1 + $0x10] sm:$0xff]
  %v18 = vld [vmem:[%s1 + $0x18] sm:$0xff]
  %v19 = vld [vmem:[%s1 + $0x20] sm:$0xff]
  %v20 = vld [vmem:[%s1 + $0x28] sm:$0xff]
  %v21 = vld [vmem:[%s1 + $0x30] sm:$0xff]
  %v22 = vld [vmem:[%s1 + $0x38] sm:$0xff]
  %v23 = vld [vmem:[%s1 + $0x40] sm:$0xff]
  %v24 = vld [vmem:[%s1 + $0x48] sm:$0xff]
  %v25 = vld [vmem:[%s1 + $0x50] sm:$0xff]
  %v26 = vld [vmem:[%s1 + $0x58] sm:$0xff]
  %v27 = vld [vmem:[%s1 + $0x60] sm:$0xff]
  %v28 = vld [vmem:[%s1 + $0x68] sm:$0xff]
  %v29 = vld [vmem:[%s1 + $0x70] sm:$0xff]
  %v30 = vld [vmem:[%s1 + $0x78] sm:$0xff]
  %v31 = vld [vmem:[%s2] sm:$0x1]
  %v33 = vperm.slane %v31, 0
  %35 = vmatpush.msra.mxu0 %v30
  %36 = vmatpush.msra.mxu0 %v29
  %37 = vmatpush.msra.mxu0 %v28
  %38 = vmatpush.msra.mxu0 %v27
  %39 = vmatpush.msra.mxu0 %v26
  %40 = vmatpush.msra.mxu0 %v25
  %41 = vmatpush.msra.mxu0 %v24
  %42 = vmatpush.msra.mxu0 %v23
  %43 = vmatpush.msra.mxu0 %v22
  %44 = vmatpush.msra.mxu0 %v21
  %45 = vmatpush.msra.mxu0 %v20
  %46 = vmatpush.msra.mxu0 %v19
  %47 = vmatpush.msra.mxu0 %v18
  %48 = vmatpush.msra.mxu0 %v17
  %49 = vmatpush.msra.mxu0 %v16
  %50 = vmatpush.msra.mxu0 %v15
  %51 = vmatmul.f32.gmra.mxu0 %v14
  %v52 = vpop.f32.mrf.mxu0
  %v53 = vadd.f32 %v33, %v52
  %54 = vdwg.mxu0
  %vm55 = vcmask 31744
  %56 = vst.msk [vmem:[%s3] sm:$0xff] %vm55, %v53
  // Predicated region
  $region14: #{tpu_custom_call.1} parent=0 // pred_check
    _
  $region15: #{tpu_custom_call.1} parent=0 // pred_check_branch
    %58 = sbr.rel (0) target = $region17
  $region16: #{tpu_custom_call.1} parent=0 // pred_region
    _
  $region17: #{tpu_custom_call.1} parent=0 // pred_fallthru
    _
  // Predicated region
  $region18: #{tpu_custom_call.1} parent=0 // pred_check
    _
  $region19: #{tpu_custom_call.1} parent=0 // pred_check_branch
    %60 = sbr.rel (0) target = $region21
  $region20: #{tpu_custom_call.1} parent=0 // pred_region
    _
  $region21: #{tpu_custom_call.1} parent=0 // pred_fallthru
    _

</llo_original>
